<compile_context>
chip_gen: v5e
topology: v5e:2x2
jax: 0.10.0
libtpu: 0.0.40
codegen_flags: <defaults>
</compile_context>

<pallas_src>
import functools

import jax
import jax.numpy as jnp
from jax.experimental import pallas as pl
from jax.experimental.pallas import tpu as pltpu

TEMP = 1.2
ALPHA = 0.7


def _round_up(x, m):
    return ((x + m - 1) // m) * m


def _kd_partial_kernel(s_ref, t_ref, picked_ref, out_ref, *, tb, b_total, ragged):
    # s_ref/t_ref: [TB, C] native dtypes;  picked_ref: [TB, 1] f32 (student logit @ target)
    s = s_ref[...].astype(jnp.float32)
    t = t_ref[...].astype(jnp.float32)
    picked = picked_ref[...]                                              # [TB, 1] f32

    TB = s.shape[0]
    inv_T = jnp.float32(1.0 / TEMP)

    if ragged:
        # Clamp garbage rows of the partial edge block BEFORE any exp/log, then mask
        # the per-row results again before the scalar sums.
        row = jax.lax.broadcasted_iota(jnp.int32, (TB, 1), 0)
        row_ok = (pl.program_id(0) * tb + row) < b_total                  # [TB, 1] bool
        s = jnp.where(row_ok, s, 0.0)
        t = jnp.where(row_ok, t, 0.0)

    # ---------------- cross entropy at T = 1 ----------------
    s_max = jnp.max(s, axis=1, keepdims=True)
    s_shift = s - s_max
    lse = jnp.log(jnp.sum(jnp.exp(s_shift), axis=1, keepdims=True)) + s_max  # [TB,1]
    ce_rows = lse - picked                                                   # [TB,1]

    # ---------------- KL divergence at temperature T ----------------
    # max(s/T) == max(s)/T (T > 0), so reuse s_shift.
    s_t_shift = s_shift * inv_T
    s_t_lse = jnp.log(jnp.sum(jnp.exp(s_t_shift), axis=1, keepdims=True))    # [TB,1]

    t_max = jnp.max(t, axis=1, keepdims=True)
    t_t_shift = (t - t_max) * inv_T
    t_exp = jnp.exp(t_t_shift)
    t_sum = jnp.sum(t_exp, axis=1, keepdims=True)                            # [TB,1]

    # sum_j p_j * (log p_j - log q_j)  with  p = t_exp / t_sum,
    # log p - log q = (t_t_shift - s_t_shift) + (s_t_lse - log t_sum);  sum_j p_j == 1.
    row_const = s_t_lse - jnp.log(t_sum)                                     # [TB,1]
    kl_rows = (jnp.sum(t_exp * (t_t_shift - s_t_shift), axis=1, keepdims=True)
               / t_sum) + row_const                                          # [TB,1]

    if ragged:
        ce_rows = jnp.where(row_ok, ce_rows, 0.0)
        kl_rows = jnp.where(row_ok, kl_rows, 0.0)

    ce_sum = jnp.sum(ce_rows)
    kl_sum = jnp.sum(kl_rows)

    # ------------- write per-tile partials into a lane-dense (8,128) slab -------------
    lane = jax.lax.broadcasted_iota(jnp.int32, (8, 128), 1)
    sub = jax.lax.broadcasted_iota(jnp.int32, (8, 128), 0)
    slab = jnp.where((sub == 0) & (lane == 0), ce_sum,
                     jnp.where((sub == 0) & (lane == 1), kl_sum, 0.0))
    out_ref[0] = slab


@jax.jit
def kd_loss(logits_student, logits_teacher, target):
    """logits_*: [B, C] float (any float dtype, may differ); target: [B] int class ids."""
    B, C = logits_student.shape

    # Hoist the target-logit pick: a B-element gather, negligible traffic.
    picked = jnp.take_along_axis(
        logits_student, target.astype(jnp.int32)[:, None], axis=1
    ).astype(jnp.float32)                                                 # [B, 1]

    # Batch tile: multiple of 8, sized so one input tile is <= ~4 MiB f32-equivalent.
    tb_cap = max(8, min(512, ((4 << 20) // (max(C, 1) * 4)) // 8 * 8))
    if B >= 16:
        TB = min(tb_cap, _round_up(B, 8))
        if TB >= B:
            # Guarantee >= 2 grid tiles so both v7x TensorCores get work.
            TB = max(8, ((_round_up(B, 8) // 2) // 8) * 8)
    else:
        TB = B  # block dim == full array dim (allowed even if not a multiple of 8)
    num_tiles = -(-B // TB)
    ragged = (B % TB) != 0

    kernel = functools.partial(_kd_partial_kernel, tb=TB, b_total=B, ragged=ragged)

    partials = pl.pallas_call(
        kernel,
        out_shape=jax.ShapeDtypeStruct((num_tiles, 8, 128), jnp.float32),
        grid_spec=pltpu.PrefetchScalarGridSpec(
            num_scalar_prefetch=0,
            grid=(num_tiles,),
            in_specs=[
                pl.BlockSpec((TB, C), lambda i: (i, 0)),   # student logits, native dtype
                pl.BlockSpec((TB, C), lambda i: (i, 0)),   # teacher logits, native dtype
                pl.BlockSpec((TB, 1), lambda i: (i, 0)),   # picked student logit (f32)
            ],
            out_specs=pl.BlockSpec((1, 8, 128), lambda i: (i, 0, 0)),
        ),
        compiler_params=pltpu.CompilerParams(
            dimension_semantics=("parallel",),
            vmem_limit_bytes=48 * 1024 * 1024,
        ),
    )(logits_student, logits_teacher, picked)

    ce = jnp.sum(partials[:, 0, 0]) / jnp.float32(B)
    kl = jnp.sum(partials[:, 0, 1]) / jnp.float32(B * C)  # F.kl_div 'mean' divides by B*C
    return kl * jnp.float32(ALPHA * TEMP * TEMP) + ce * jnp.float32(1.0 - ALPHA)


def kd_loss_ref(logits_student, logits_teacher, target):
    """Pure-JAX reference for sanity checking (f32 math)."""
    s = logits_student.astype(jnp.float32)
    t = logits_teacher.astype(jnp.float32)
    B, C = s.shape
    log_p = jax.nn.log_softmax(s, axis=1)
    ce = -jnp.mean(log_p[jnp.arange(B), target])
    log_p_s = jax.nn.log_softmax(s / TEMP, axis=1)
    p_t = jax.nn.softmax(t / TEMP, axis=1)
    kl = jnp.sum(p_t * (jnp.log(p_t) - log_p_s)) / (B * C)
    return kl * (ALPHA * TEMP * TEMP) + ce * (1.0 - ALPHA)


if __name__ == "__main__":
    # Case 1: small, non-128 class count, single full-batch tile.
    key = jax.random.PRNGKey(0)
    k1, k2, k3 = jax.random.split(key, 3)
    B, C = 8, 32
    logits_student = jax.random.normal(k1, (B, C), dtype=jnp.float32)
    logits_teacher = jax.random.normal(k2, (B, C), dtype=jnp.float32)
    target = jax.random.randint(k3, (B,), 0, C, dtype=jnp.int32)

    loss = kd_loss(logits_student, logits_teacher, target)
    jax.block_until_ready(loss)
    ref = kd_loss_ref(logits_student, logits_teacher, target)
    assert jnp.allclose(loss, ref, atol=1e-3, rtol=2e-3), (loss, ref)

    # Case 2: ragged multi-tile batch (B % TB != 0), mixed dtypes (teacher bf16, no upcast).
    k4, k5, k6 = jax.random.split(jax.random.PRNGKey(0), 3)
    B2, C2 = 20, 200
    ls2 = jax.random.normal(k4, (B2, C2), dtype=jnp.float32)
    lt2 = jax.random.normal(k5, (B2, C2), dtype=jnp.float32).astype(jnp.bfloat16)
    tgt2 = jax.random.randint(k6, (B2,), 0, C2, dtype=jnp.int32)

    loss2 = kd_loss(ls2, lt2, tgt2)
    jax.block_until_ready(loss2)
    ref2 = kd_loss_ref(ls2, lt2, tgt2)
    assert jnp.allclose(loss2, ref2, atol=1e-3, rtol=2e-3), (loss2, ref2)

    print("KERNEL_OK")
</pallas_src>

<mosaic_0001>
module attributes {stable_mosaic.version = 11 : i64} {
  func.func @_kd_partial_kernel(%arg0: i32, %arg1: memref<8x32xf32, #tpu.memory_space<vmem>>, %arg2: memref<8x32xf32, #tpu.memory_space<vmem>>, %arg3: memref<8x1xf32, #tpu.memory_space<vmem>>, %arg4: memref<1x8x128xf32, #tpu.memory_space<vmem>>) attributes {dimension_semantics = [#tpu.dimension_semantics<parallel>], iteration_bounds = array<i64: 1>, scalar_prefetch = 0 : i64, scratch_operands = 0 : i64, tpu.core_type = #tpu.core_type<tc>, window_params = [{transform_indices = @transform_0, window_bounds = array<i64: 8, 32>}, {transform_indices = @transform_1, window_bounds = array<i64: 8, 32>}, {transform_indices = @transform_2, window_bounds = array<i64: 8, 1>}, {transform_indices = @transform_3, window_bounds = array<i64: 1, 8, 128>}]} {
    %c0 = arith.constant 0 : index
    %c0_0 = arith.constant 0 : index
    %0 = vector.load %arg1[%c0, %c0_0] : memref<8x32xf32, #tpu.memory_space<vmem>>, vector<8x32xf32>
    %c0_1 = arith.constant 0 : index
    %c0_2 = arith.constant 0 : index
    %1 = vector.load %arg2[%c0_1, %c0_2] : memref<8x32xf32, #tpu.memory_space<vmem>>, vector<8x32xf32>
    %c0_3 = arith.constant 0 : index
    %c0_4 = arith.constant 0 : index
    %2 = vector.load %arg3[%c0_3, %c0_4] : memref<8x1xf32, #tpu.memory_space<vmem>>, vector<8x1xf32>
    %cst = arith.constant dense<0xFF800000> : vector<8xf32>
    %3 = vector.multi_reduction <maximumf>, %0, %cst [1] : vector<8x32xf32> to vector<8xf32>
    %4 = vector.shape_cast %3 : vector<8xf32> to vector<8x1xf32>
    %5 = vector.broadcast %4 : vector<8x1xf32> to vector<8x32xf32>
    %6 = arith.subf %0, %5 : vector<8x32xf32>
    %7 = math.exp %6 : vector<8x32xf32>
    %cst_5 = arith.constant dense<0.000000e+00> : vector<8xf32>
    %8 = vector.multi_reduction <add>, %7, %cst_5 [1] : vector<8x32xf32> to vector<8xf32>
    %9 = vector.shape_cast %8 : vector<8xf32> to vector<8x1xf32>
    %10 = math.log %9 : vector<8x1xf32>
    %11 = arith.addf %10, %4 : vector<8x1xf32>
    %12 = arith.subf %11, %2 : vector<8x1xf32>
    %cst_6 = arith.constant 0.833333313 : f32
    %13 = vector.broadcast %cst_6 : f32 to vector<8x32xf32>
    %14 = arith.mulf %6, %13 : vector<8x32xf32>
    %15 = math.exp %14 : vector<8x32xf32>
    %cst_7 = arith.constant dense<0.000000e+00> : vector<8xf32>
    %16 = vector.multi_reduction <add>, %15, %cst_7 [1] : vector<8x32xf32> to vector<8xf32>
    %17 = vector.shape_cast %16 : vector<8xf32> to vector<8x1xf32>
    %18 = math.log %17 : vector<8x1xf32>
    %cst_8 = arith.constant dense<0xFF800000> : vector<8xf32>
    %19 = vector.multi_reduction <maximumf>, %1, %cst_8 [1] : vector<8x32xf32> to vector<8xf32>
    %20 = vector.shape_cast %19 : vector<8xf32> to vector<8x1xf32>
    %21 = vector.broadcast %20 : vector<8x1xf32> to vector<8x32xf32>
    %22 = arith.subf %1, %21 : vector<8x32xf32>
    %cst_9 = arith.constant 0.833333313 : f32
    %23 = vector.broadcast %cst_9 : f32 to vector<8x32xf32>
    %24 = arith.mulf %22, %23 : vector<8x32xf32>
    %25 = math.exp %24 : vector<8x32xf32>
    %cst_10 = arith.constant dense<0.000000e+00> : vector<8xf32>
    %26 = vector.multi_reduction <add>, %25, %cst_10 [1] : vector<8x32xf32> to vector<8xf32>
    %27 = vector.shape_cast %26 : vector<8xf32> to vector<8x1xf32>
    %28 = math.log %27 : vector<8x1xf32>
    %29 = arith.subf %18, %28 : vector<8x1xf32>
    %30 = arith.subf %24, %14 : vector<8x32xf32>
    %31 = arith.mulf %25, %30 : vector<8x32xf32>
    %cst_11 = arith.constant dense<0.000000e+00> : vector<8xf32>
    %32 = vector.multi_reduction <add>, %31, %cst_11 [1] : vector<8x32xf32> to vector<8xf32>
    %33 = vector.shape_cast %32 : vector<8xf32> to vector<8x1xf32>
    %34 = arith.divf %33, %27 : vector<8x1xf32>
    %35 = arith.addf %34, %29 : vector<8x1xf32>
    %36 = vector.shape_cast %12 : vector<8x1xf32> to vector<1x8x1xf32>
    %cst_12 = arith.constant dense<0.000000e+00> : vector<1xf32>
    %37 = vector.multi_reduction <add>, %36, %cst_12 [1, 2] : vector<1x8x1xf32> to vector<1xf32>
    %38 = vector.shape_cast %37 : vector<1xf32> to vector<1x1x1xf32>
    %39 = vector.extract %38[0, 0, 0] : f32 from vector<1x1x1xf32>
    %40 = vector.shape_cast %35 : vector<8x1xf32> to vector<1x8x1xf32>
    %cst_13 = arith.constant dense<0.000000e+00> : vector<1xf32>
    %41 = vector.multi_reduction <add>, %40, %cst_13 [1, 2] : vector<1x8x1xf32> to vector<1xf32>
    %42 = vector.shape_cast %41 : vector<1xf32> to vector<1x1x1xf32>
    %43 = vector.extract %42[0, 0, 0] : f32 from vector<1x1x1xf32>
    %44 = tpu.iota {dimensions = array<i32: 1>} : vector<8x128xi32>
    %45 = tpu.iota {dimensions = array<i32: 0>} : vector<8x128xi32>
    %c0_i32 = arith.constant 0 : i32
    %46 = vector.broadcast %c0_i32 : i32 to vector<8x128xi32>
    %47 = arith.cmpi eq, %45, %46 : vector<8x128xi32>
    %c0_i32_14 = arith.constant 0 : i32
    %48 = vector.broadcast %c0_i32_14 : i32 to vector<8x128xi32>
    %49 = arith.cmpi eq, %44, %48 : vector<8x128xi32>
    %50 = arith.andi %47, %49 : vector<8x128xi1>
    %c0_i32_15 = arith.constant 0 : i32
    %51 = vector.broadcast %c0_i32_15 : i32 to vector<8x128xi32>
    %52 = arith.cmpi eq, %45, %51 : vector<8x128xi32>
    %c1_i32 = arith.constant 1 : i32
    %53 = vector.broadcast %c1_i32 : i32 to vector<8x128xi32>
    %54 = arith.cmpi eq, %44, %53 : vector<8x128xi32>
    %55 = arith.andi %52, %54 : vector<8x128xi1>
    %cst_16 = arith.constant 0.000000e+00 : f32
    %56 = vector.broadcast %43 : f32 to vector<8x128xf32>
    %57 = vector.broadcast %cst_16 : f32 to vector<8x128xf32>
    %58 = arith.select %55, %56, %57 : vector<8x128xi1>, vector<8x128xf32>
    %59 = vector.broadcast %39 : f32 to vector<8x128xf32>
    %60 = arith.select %50, %59, %58 : vector<8x128xi1>, vector<8x128xf32>
    %c0_17 = arith.constant 0 : index
    %c0_18 = arith.constant 0 : index
    %c0_19 = arith.constant 0 : index
    %61 = vector.load %arg4[%c0_17, %c0_18, %c0_19] : memref<1x8x128xf32, #tpu.memory_space<vmem>>, vector<1x8x128xf32>
    %62 = vector.shape_cast %61 : vector<1x8x128xf32> to vector<8x128xf32>
    %63 = vector.shape_cast %60 : vector<8x128xf32> to vector<1x8x128xf32>
    tpu.vector_store %arg4[%c0_17, %c0_18, %c0_19], %63 {strides = array<i32>} : memref<1x8x128xf32, #tpu.memory_space<vmem>>, vector<1x8x128xf32>,
    return
  }
  func.func @transform_0(%arg0: i32) -> (i32, i32) {
    %c0_i32 = arith.constant 0 : i32
    %c0_i32_0 = arith.constant 0 : i32
    return %arg0, %c0_i32 : i32, i32
  }
  func.func @transform_1(%arg0: i32) -> (i32, i32) {
    %c0_i32 = arith.constant 0 : i32
    %c0_i32_0 = arith.constant 0 : i32
    return %arg0, %c0_i32 : i32, i32
  }
  func.func @transform_2(%arg0: i32) -> (i32, i32) {
    %c0_i32 = arith.constant 0 : i32
    %c0_i32_0 = arith.constant 0 : i32
    return %arg0, %c0_i32 : i32, i32
  }
  func.func @transform_3(%arg0: i32) -> (i32, i32, i32) {
    %c0_i32 = arith.constant 0 : i32
    %c0_i32_0 = arith.constant 0 : i32
    %c0_i32_1 = arith.constant 0 : i32
    return %arg0, %c0_i32, %c0_i32_0 : i32, i32, i32
  }
}

</mosaic_0001>

<llo_original>
// kernel: kd_loss.1
$region0: #{kd_loss.1}
  #allocation0 [shape = 'u32[]', space=smem, size = 0x4, offset = 0x4, fixed_abs, tag = 'smem constant byte address 0x4 - core index']
  #allocation1 [shape = 'u32[72,128]{1,0:T(1,128)}', space=vmem, size = 0x9000, scoped, tag = 'internal scratch']
  %s0 = inlined_call_operand.vmem [shape: f32[8,32], index: 0, kind: input, shape index: {}]
  %s1 = inlined_call_operand.vmem [shape: f32[8,32], index: 1, kind: input, shape index: {}]
  %s2 = inlined_call_operand.vmem [shape: f32[8,1], index: 2, kind: input, shape index: {}]
  %s3 = inlined_call_operand.vmem [shape: f32[1,8,128], index: 3, kind: output, shape index: {}]
  %s4 = sld [smem:[#allocation0]]
  $region22: #{kd_loss.1} parent=0
    _
  %s6 = ssub.s32 1, %s4
  %s7 = scalar_select 0, %s6, %s4
  // Predicated region
  $region2: #{kd_loss.1} parent=0 // pred_check
    _
  $region3: #{kd_loss.1} parent=0 // pred_check_branch
    %9 = sbr.rel (0) target = $region5
  $region4: #{kd_loss.1} parent=0 // pred_region
    _
  $region5: #{kd_loss.1} parent=0 // pred_fallthru
    _
  // Predicated region
  $region6: #{kd_loss.1} parent=0 // pred_check
    _
  $region7: #{kd_loss.1} parent=0 // pred_check_branch
    %11 = sbr.rel (0) target = $region9
  $region8: #{kd_loss.1} parent=0 // pred_region
    _
  $region9: #{kd_loss.1} parent=0 // pred_fallthru
    _
  // Predicated region
  $region10: #{kd_loss.1} parent=0 // pred_check
    _
  $region11: #{kd_loss.1} parent=0 // pred_check_branch
    %13 = sbr.rel (0) target = $region13
  $region12: #{kd_loss.1} parent=0 // pred_region
    _
  $region13: #{kd_loss.1} parent=0 // pred_fallthru
    _
  %v14 = vld [vmem:[%s0] sm:$0xff]
  %v15 = vld [vmem:[%s1] sm:$0xff]
  %v16 = vld [vmem:[%s2] sm:$0xff]
  %vm17 = vcmask 261120
  %v18 = vsel %vm17, %v14, -inf
  %19 = vmax.xlane.f32.xlu0 %v18
  %v20 = vpop.xlane.xlu0 %19
  %v21 = vsub.f32 %v14, %v20
  %v22 = vmul.f32 %v21, 1.442695
  %v23 = vpow.pop %v22
  %v24 = vsel %vm17, %v23, 0.0
  %25 = vadd.xlane.f32.xlu0 %v24
  %v26 = vpop.xlane.xlu0 %25
  %v27 = vlog2.pop %v26
  %v28 = vmul.f32 %v27, 0.6931472
  %v29 = vadd.f32 %v28, %v20
  %v30 = vsub.f32 %v29, %v16
  %v31 = vmul.f32 %v21, 0.8333333
  %v32 = vmul.f32 %v31, 1.442695
  %v33 = vpow.pop %v32
  %v34 = vsel %vm17, %v33, 0.0
  %35 = vadd.xlane.f32.xlu0 %v34
  %v36 = vpop.xlane.xlu0 %35
  %v37 = vlog2.pop %v36
  %v38 = vmul.f32 %v37, 0.6931472
  %v39 = vsel %vm17, %v15, -inf
  %40 = vmax.xlane.f32.xlu0 %v39
  %v41 = vpop.xlane.xlu0 %40
  %v42 = vsub.f32 %v15, %v41
  %v43 = vmul.f32 %v42, 0.8333333
  %v44 = vmul.f32 %v43, 1.442695
  %v45 = vpow.pop %v44
  %v46 = vsel %vm17, %v45, 0.0
  %47 = vadd.xlane.f32.xlu0 %v46
  %v48 = vpop.xlane.xlu0 %47
  %v49 = vlog2.pop %v48
  %v50 = vmul.f32 %v49, 0.6931472
  %v51 = vsub.f32 %v38, %v50
  %v52 = vsub.f32 %v43, %v31
  %v53 = vmul.f32 %v45, %v52
  %v54 = vsel %vm17, %v53, 0.0
  %55 = vadd.xlane.f32.xlu0 %v54
  %v56 = vpop.xlane.xlu0 %55
  %v57 = vrcp.pop %v48
  %v58 = vmul.f32 %v48, %v57
  %v59 = vsub.f32 1.0, %v58
  %v60 = vmul.f32 %v57, %v59
  %v61 = vadd.f32 %v57, %v60
  %vm62 = vweird.f32 %v48
  %vm63 = vweird.f32 %v57
  %vm64 = vmor %vm62, %vm63
  %v65 = vsel %vm64, %v57, %v61
  %v66 = vand.u32 2147483647, %v48
  %vm67 = vcmp.eq.f32.partialorder %v66, 8.507059e+37
  %v68 = vand.u32 %v48, 2147483648
  %v69 = vor.u32 1.1754944e-38, %v68
  %v70 = vsel %vm67, %v69, %v65
  %v71 = vmul.f32 %v56, %v70
  %v72 = vadd.f32 %v71, %v51
  %vm73 = vcmask 7168
  %v74 = vsel %vm73, %v30, 0.0
  %75 = vadd.xlane.f32.xlu0 %v74
  %v76 = vpop.xlane.xlu0 %75
  %v77 = vrot.slane %v76, 4
  %v78 = vadd.f32 %v76, %v77
  %v79 = vrot.slane %v78, 2
  %v80 = vadd.f32 %v78, %v79
  %v81 = vrot.slane %v80, 1
  %v82 = vadd.f32 %v80, %v81
  %s83 = vtos %v82
  %v84 = vsel %vm73, %v72, 0.0
  %85 = vadd.xlane.f32.xlu0 %v84
  %v86 = vpop.xlane.xlu0 %85
  %v87 = vrot.slane %v86, 4
  %v88 = vadd.f32 %v86, %v87
  %v89 = vrot.slane %v88, 2
  %v90 = vadd.f32 %v88, %v89
  %v91 = vrot.slane %v90, 1
  %v92 = vadd.f32 %v90, %v91
  %s93 = vtos %v92
  %v94 = vlaneseq
  %v95 = vand.u32 %v94, 127
  %v96 = vlaneseq
  %v97 = vshrl.u32 %v96, 7
  %vm98 = vcmp.eq.s32.totalorder %v97, 0
  %vm99 = vcmp.eq.s32.totalorder %v95, 0
  %vm100 = vmand %vm98, %vm99
  %vm101 = vcmp.eq.s32.totalorder %v95, 1
  %vm102 = vmand %vm98, %vm101
  %v103 = vstv %s93
  %v104 = vsel %vm102, %v103, 0.0
  %v105 = vstv %s83
  %v106 = vsel %vm100, %v105, %v104
  %107 = vst [vmem:[%s3] sm:$0xff] %v106
  // Predicated region
  $region14: #{kd_loss.1} parent=0 // pred_check
    _
  $region15: #{kd_loss.1} parent=0 // pred_check_branch
    %109 = sbr.rel (0) target = $region17
  $region16: #{kd_loss.1} parent=0 // pred_region
    _
  $region17: #{kd_loss.1} parent=0 // pred_fallthru
    _
  // Predicated region
  $region18: #{kd_loss.1} parent=0 // pred_check
    _
  $region19: #{kd_loss.1} parent=0 // pred_check_branch
    %111 = sbr.rel (0) target = $region21
  $region20: #{kd_loss.1} parent=0 // pred_region
    _
  $region21: #{kd_loss.1} parent=0 // pred_fallthru
    _

</llo_original>
